<compile_context>
chip_gen: v5e
topology: v5e:2x2
jax: 0.10.0
libtpu: 0.0.40
codegen_flags: <defaults>
</compile_context>

<pallas_src>
import math
from typing import NamedTuple, Optional

import jax
import jax.numpy as jnp
from jax.experimental import pallas as pl
from jax.experimental.pallas import tpu as pltpu


# ----------------------------------------------------------------------------- helpers
def _round_up(x, m):
    return ((x + m - 1) // m) * m


# Candidate tile sizes (all legal for their axis).  Lane tiles are multiples of
# 128; M (sublane) tiles are multiples of 8 (192/384 included for odd shapes).
_M_TILES = (512, 384, 256, 192, 128)
_LANE_TILES = (2048, 1024, 768, 512, 384, 256, 128)


def _choose_tile(dim, cap, candidates):
    """Pick (tile, padded_dim) for one problem dimension.

    Preference order:
      1. dim fits in one block            -> full-extent block, no padding
      2. a candidate tile divides dim     -> that tile, no padding (no HBM copy)
      3. pad dim to a 128-multiple once and pick the largest dividing candidate
    """
    cap = max(cap, 128)
    if dim <= cap:
        return dim, dim
    for t in candidates:
        if t <= cap and dim % t == 0:
            return t, dim
    padded = _round_up(dim, 128)
    for t in candidates:
        if t <= cap and padded % t == 0:
            return t, padded
    return 128, padded


# ----------------------------------------------------------------------------- kernels
def _matmul_bias_kernel(x_ref, w_ref, b_ref, o_ref, acc_ref):
    # x_ref: (tm, tk), w_ref: (tk, tn), b_ref: (1, tn) f32, o_ref: (tm, tn)
    k = pl.program_id(2)

    @pl.when(k == 0)
    def _():
        acc_ref[...] = jnp.zeros_like(acc_ref)

    acc_ref[...] += jnp.dot(x_ref[...], w_ref[...],
                            preferred_element_type=jnp.float32)

    @pl.when(k == pl.num_programs(2) - 1)
    def _():
        o_ref[...] = (acc_ref[...] + b_ref[...]).astype(o_ref.dtype)


def _matmul_kernel(x_ref, w_ref, o_ref, acc_ref):
    k = pl.program_id(2)

    @pl.when(k == 0)
    def _():
        acc_ref[...] = jnp.zeros_like(acc_ref)

    acc_ref[...] += jnp.dot(x_ref[...], w_ref[...],
                            preferred_element_type=jnp.float32)

    @pl.when(k == pl.num_programs(2) - 1)
    def _():
        o_ref[...] = acc_ref[...].astype(o_ref.dtype)


# ----------------------------------------------------------------------------- weight prep (load time)
class PreparedWeight(NamedTuple):
    w_t: jax.Array                  # (Kp, Np) lane-dense, compute dtype
    bias2d: Optional[jax.Array]     # (1, Np) float32, or None
    in_features: int                # K (per partition)
    out_features: int               # N
    kp: int
    np_padded: int
    tk: int
    tn: int


def prepare_row_parallel_weight(weight, bias=None, *, compute_dtype=None,
                                tn_cap=512, tk_cap=1024):
    """One-time (parameter-load-time) weight preparation.

    Transposes the PyTorch-layout (N, K) weight to (K, N), pins the compute
    dtype, chooses the K/N tiles, and pads only if no tile divides the dim.
    Pass tn_cap=1024 / tk_cap=2048 for decode-style workloads (tiny M) to spend
    the freed VMEM on larger weight tiles.
    """
    weight = jnp.asarray(weight)
    n, k = weight.shape
    if compute_dtype is None:
        compute_dtype = weight.dtype      # e.g. jnp.bfloat16 for MXU-native speed
    tk, kp = _choose_tile(k, tk_cap, _LANE_TILES)
    tn, np_p = _choose_tile(n, tn_cap, _LANE_TILES)

    w_t = weight.T.astype(compute_dtype)          # one-time transpose
    if (kp, np_p) != (k, n):
        w_t = jnp.pad(w_t, ((0, kp - k), (0, np_p - n)))   # one-time pad

    bias2d = None
    if bias is not None:
        # Bias stays float32: added to the f32 accumulator, single cast at end.
        bias2d = jnp.asarray(bias, jnp.float32).reshape(1, n)
        if np_p != n:
            bias2d = jnp.pad(bias2d, ((0, 0), (0, np_p - n)))

    return PreparedWeight(w_t, bias2d, k, n, kp, np_p, tk, tn)


# ----------------------------------------------------------------------------- forward (hot path)
def row_parallel_linear_partitioned(x, prepared: PreparedWeight, *,
                                    input_is_parallel=True, tm_cap=512):
    """Forward of RowParallelLinearPartitioned for a single partition.

    x: (..., input_size_per_partition); prepared: see prepare_row_parallel_weight.
    """
    # TODO(synk): multi-rank behavior (scatter_to_model_parallel_region of the
    # input feature axis + all-reduce of partial sums) is identity here;
    # single model-parallel partition only.
    x = jnp.asarray(x)
    *lead, k = x.shape
    assert k == prepared.in_features, "x last dim must match weight in_features"
    m = 1
    for d in lead:
        m *= d

    out_dtype = jnp.result_type(x.dtype, prepared.w_t.dtype)
    x2 = x.reshape(m, k)
    if x2.dtype != prepared.w_t.dtype:
        x2 = x2.astype(prepared.w_t.dtype)        # pin both operands to one dtype

    tm, mp = _choose_tile(m, tm_cap, _M_TILES)
    kp, np_p, tk, tn = prepared.kp, prepared.np_padded, prepared.tk, prepared.tn
    if (mp, kp) != (m, k):
        x2 = jnp.pad(x2, ((0, mp - m), (0, kp - k)))

    grid = (mp // tm, np_p // tn, kp // tk)
    n_mb, n_nb = grid[0], grid[1]

    in_bytes = jnp.dtype(prepared.w_t.dtype).itemsize
    out_bytes = jnp.dtype(out_dtype).itemsize

    # Real HBM traffic: x is re-read once per N block, W once per M block.
    cost = pl.CostEstimate(
        flops=2 * m * prepared.out_features * k,
        transcendentals=0,
        bytes_accessed=(mp * kp * in_bytes * n_nb
                        + kp * np_p * in_bytes * n_mb
                        + (np_p * 4 if prepared.bias2d is not None else 0)
                        + mp * np_p * out_bytes),
    )

    # VMEM working set: double-buffered x/w/out tiles + resident f32 accumulator.
    # Default tile caps keep this well under ~32 MiB -> safe on v7x (64 MiB/TC)
    # and leaves plenty of headroom on v5e/v6e (128 MiB).
    vmem_needed = (2 * tm * tk * in_bytes
                   + 2 * tk * tn * in_bytes
                   + 2 * tm * tn * out_bytes
                   + tm * tn * 4
                   + (2 * tn * 4 if prepared.bias2d is not None else 0))
    vmem_limit = max(vmem_needed + 4 * 1024 * 1024, 16 * 1024 * 1024)

    compiler_params = pltpu.CompilerParams(
        # M and N blocks are independent -> shard across TensorCores (v7x
        # megacore); only the K reduction axis is serial.
        dimension_semantics=("parallel", "parallel", "arbitrary"),
        vmem_limit_bytes=vmem_limit,
    )

    x_spec = pl.BlockSpec((tm, tk), lambda i, j, kk: (i, kk))
    # If profiling on v5e shows exposed DMA on the weight stream, add
    # pipeline_mode=pl.Buffered(3) here.
    w_spec = pl.BlockSpec((tk, tn), lambda i, j, kk: (kk, j))
    o_spec = pl.BlockSpec((tm, tn), lambda i, j, kk: (i, j))
    scratch = [pltpu.VMEM((tm, tn), jnp.float32)]

    if prepared.bias2d is not None:
        b_spec = pl.BlockSpec((1, tn), lambda i, j, kk: (0, j))
        out = pl.pallas_call(
            _matmul_bias_kernel,
            out_shape=jax.ShapeDtypeStruct((mp, np_p), out_dtype),
            grid_spec=pltpu.PrefetchScalarGridSpec(
                num_scalar_prefetch=0,
                grid=grid,
                in_specs=[x_spec, w_spec, b_spec],
                out_specs=o_spec,
                scratch_shapes=scratch,
            ),
            compiler_params=compiler_params,
            cost_estimate=cost,
        )(x2, prepared.w_t, prepared.bias2d)
    else:
        out = pl.pallas_call(
            _matmul_kernel,
            out_shape=jax.ShapeDtypeStruct((mp, np_p), out_dtype),
            grid_spec=pltpu.PrefetchScalarGridSpec(
                num_scalar_prefetch=0,
                grid=grid,
                in_specs=[x_spec, w_spec],
                out_specs=o_spec,
                scratch_shapes=scratch,
            ),
            compiler_params=compiler_params,
            cost_estimate=cost,
        )(x2, prepared.w_t)

    n = prepared.out_features
    if (mp, np_p) != (m, n):
        out = out[:m, :n]                 # only when padding was unavoidable
    return out.reshape(*lead, n)


def row_parallel_linear(x, weight, bias=None, input_is_parallel=False, **kwargs):
    """One-shot convenience matching the PyTorch module signature.

    Does the weight transpose/pad on the fly (one extra HBM pass per call);
    prefer prepare_row_parallel_weight(...) once at parameter-load time.
    """
    prepared = prepare_row_parallel_weight(weight, bias)
    return row_parallel_linear_partitioned(
        x, prepared, input_is_parallel=input_is_parallel, **kwargs)


# ----------------------------------------------------------------------------- init + self-test
def _xavier_normal(key, out_features, in_features, dtype=jnp.float32):
    # matches torch.nn.init.xavier_normal_ for a 2-D weight
    std = math.sqrt(2.0 / (in_features + out_features))
    return std * jax.random.normal(key, (out_features, in_features), dtype=dtype)


if __name__ == "__main__":
    key = jax.random.PRNGKey(0)
    k_x, k_w = jax.random.split(key)

    batch, seq = 2, 8
    input_size_per_partition = 32
    out_features = 32

    x = jax.random.normal(
        k_x, (batch, seq, input_size_per_partition), dtype=jnp.float32)
    weight = _xavier_normal(k_w, out_features, input_size_per_partition)
    bias = jnp.zeros((out_features,), dtype=jnp.float32)  # nn.Parameter(torch.zeros(...))

    # Parameter-load-time preparation (transpose / pad / dtype-pin happen once).
    prepared = prepare_row_parallel_weight(weight, bias)
    prepared_nobias = prepare_row_parallel_weight(weight, None)

    # bias path
    y = jax.block_until_ready(
        row_parallel_linear_partitioned(x, prepared, input_is_parallel=True))
    y_ref = x @ weight.T + bias
    assert y.shape == (batch, seq, out_features)
    assert jnp.allclose(y, y_ref, atol=1e-5, rtol=1e-5)

    # no-bias path (register_parameter('bias', None) case)
    y2 = jax.block_until_ready(
        row_parallel_linear_partitioned(x, prepared_nobias, input_is_parallel=True))
    assert jnp.allclose(y2, x @ weight.T, atol=1e-5, rtol=1e-5)

    # convenience (un-prepared) path matching the original module call shape
    y3 = jax.block_until_ready(
        row_parallel_linear(x, weight, bias, input_is_parallel=True))
    assert jnp.allclose(y3, y_ref, atol=1e-5, rtol=1e-5)

    print("KERNEL_OK")
</pallas_src>

<mosaic_0001>
module attributes {stable_mosaic.version = 11 : i64} {
  func.func @_matmul_bias_kernel(%arg0: i32, %arg1: i32, %arg2: i32, %arg3: memref<16x32xf32, #tpu.memory_space<vmem>>, %arg4: memref<32x32xf32, #tpu.memory_space<vmem>>, %arg5: memref<1x32xf32, #tpu.memory_space<vmem>>, %arg6: memref<16x32xf32, #tpu.memory_space<vmem>>, %arg7: memref<16x32xf32, #tpu.memory_space<vmem>>) attributes {dimension_semantics = [#tpu.dimension_semantics<parallel>, #tpu.dimension_semantics<parallel>, #tpu.dimension_semantics<arbitrary>], iteration_bounds = array<i64: 1, 1, 1>, scalar_prefetch = 0 : i64, scratch_operands = 1 : i64, tpu.core_type = #tpu.core_type<tc>, window_params = [{transform_indices = @transform_0, window_bounds = array<i64: 16, 32>}, {transform_indices = @transform_1, window_bounds = array<i64: 32, 32>}, {transform_indices = @transform_2, window_bounds = array<i64: 1, 32>}, {transform_indices = @transform_3, window_bounds = array<i64: 16, 32>}]} {
    %c0_i32 = arith.constant 0 : i32
    %0 = arith.cmpi eq, %arg2, %c0_i32 : i32
    %1 = arith.extui %0 : i1 to i32
    %c0_i32_0 = arith.constant 0 : i32
    %2 = arith.cmpi ne, %1, %c0_i32_0 : i32
    scf.if %2 {
      %cst_10 = arith.constant 0.000000e+00 : f32
      %12 = vector.broadcast %cst_10 : f32 to vector<16x32xf32>
      %c0_11 = arith.constant 0 : index
      %c0_12 = arith.constant 0 : index
      %13 = vector.load %arg7[%c0_11, %c0_12] : memref<16x32xf32, #tpu.memory_space<vmem>>, vector<16x32xf32>
      tpu.vector_store %arg7[%c0_11, %c0_12], %12 {strides = array<i32>} : memref<16x32xf32, #tpu.memory_space<vmem>>, vector<16x32xf32>,
    } else {
    }
    %c0 = arith.constant 0 : index
    %c0_1 = arith.constant 0 : index
    %3 = vector.load %arg7[%c0, %c0_1] : memref<16x32xf32, #tpu.memory_space<vmem>>, vector<16x32xf32>
    %c0_2 = arith.constant 0 : index
    %c0_3 = arith.constant 0 : index
    %4 = vector.load %arg3[%c0_2, %c0_3] : memref<16x32xf32, #tpu.memory_space<vmem>>, vector<16x32xf32>
    %c0_4 = arith.constant 0 : index
    %c0_5 = arith.constant 0 : index
    %5 = vector.load %arg4[%c0_4, %c0_5] : memref<32x32xf32, #tpu.memory_space<vmem>>, vector<32x32xf32>
    %cst = arith.constant dense<0.000000e+00> : vector<16x32xf32>
    %6 = tpu.matmul %4, %5, %cst {dimension_numbers = #tpu.dot_dimension_numbers<[1], [0], [0], [1], [0, 0, 1, 1], [], []>} : vector<16x32xf32>, vector<32x32xf32>, vector<16x32xf32> -> vector<16x32xf32>
    %7 = arith.addf %3, %6 : vector<16x32xf32>
    %c0_6 = arith.constant 0 : index
    %c0_7 = arith.constant 0 : index
    %8 = vector.load %arg7[%c0_6, %c0_7] : memref<16x32xf32, #tpu.memory_space<vmem>>, vector<16x32xf32>
    tpu.vector_store %arg7[%c0_6, %c0_7], %7 {strides = array<i32>} : memref<16x32xf32, #tpu.memory_space<vmem>>, vector<16x32xf32>,
    %c0_i32_8 = arith.constant 0 : i32
    %9 = arith.cmpi eq, %arg2, %c0_i32_8 : i32
    %10 = arith.extui %9 : i1 to i32
    %c0_i32_9 = arith.constant 0 : i32
    %11 = arith.cmpi ne, %10, %c0_i32_9 : i32
    scf.if %11 {
      %c0_10 = arith.constant 0 : index
      %c0_11 = arith.constant 0 : index
      %12 = vector.load %arg7[%c0_10, %c0_11] : memref<16x32xf32, #tpu.memory_space<vmem>>, vector<16x32xf32>
      %c0_12 = arith.constant 0 : index
      %c0_13 = arith.constant 0 : index
      %13 = vector.load %arg5[%c0_12, %c0_13] : memref<1x32xf32, #tpu.memory_space<vmem>>, vector<1x32xf32>
      %14 = vector.broadcast %13 : vector<1x32xf32> to vector<16x32xf32>
      %15 = arith.addf %12, %14 : vector<16x32xf32>
      %c0_14 = arith.constant 0 : index
      %c0_15 = arith.constant 0 : index
      %16 = vector.load %arg6[%c0_14, %c0_15] : memref<16x32xf32, #tpu.memory_space<vmem>>, vector<16x32xf32>
      tpu.vector_store %arg6[%c0_14, %c0_15], %15 {strides = array<i32>} : memref<16x32xf32, #tpu.memory_space<vmem>>, vector<16x32xf32>,
    } else {
    }
    return
  }
  func.func @transform_0(%arg0: i32, %arg1: i32, %arg2: i32) -> (i32, i32) {
    %c0_i32 = arith.constant 0 : i32
    return %arg0, %arg2 : i32, i32
  }
  func.func @transform_1(%arg0: i32, %arg1: i32, %arg2: i32) -> (i32, i32) {
    %c0_i32 = arith.constant 0 : i32
    return %arg2, %arg1 : i32, i32
  }
  func.func @transform_2(%arg0: i32, %arg1: i32, %arg2: i32) -> (i32, i32) {
    %c0_i32 = arith.constant 0 : i32
    %c0_i32_0 = arith.constant 0 : i32
    return %c0_i32, %arg1 : i32, i32
  }
  func.func @transform_3(%arg0: i32, %arg1: i32, %arg2: i32) -> (i32, i32) {
    %c0_i32 = arith.constant 0 : i32
    return %arg0, %arg1 : i32, i32
  }
}

</mosaic_0001>

<llo_original>
// kernel: tpu_custom_call.1
$region0: #{tpu_custom_call.1}
  #allocation0 [shape = 'u32[]', space=smem, size = 0x4, offset = 0x4, fixed_abs, tag = 'smem constant byte address 0x4 - core index']
  #allocation1 [shape = 'u32[72,128]{1,0:T(1,128)}', space=vmem, size = 0x9000, scoped, tag = 'internal scratch']
  #allocation2 [shape = 'f32[16,32]{1,0:T(8,128)}', space=vmem, size = 0x2000, scoped, tag = 'scratch operand']
  %s0 = inlined_call_operand.hbm [shape: f32[16,32], index: 0, kind: input, shape index: {}]
  %s1 = inlined_call_operand.hbm [shape: f32[32,32], index: 1, kind: input, shape index: {}]
  %s2 = inlined_call_operand.vmem [shape: f32[1,32], index: 2, kind: input, shape index: {}]
  %s3 = inlined_call_operand.hbm [shape: f32[16,32], index: 3, kind: output, shape index: {}]
  %s4 = sld [smem:[#allocation0]]
  $region38: #{tpu_custom_call.1} parent=0
    _
  %s6 = ssub.s32 1, %s4
  %s7 = scalar_select 0, %s6, %s4
  $region1: #{tpu_custom_call.1} parent=0
    #allocation3 [shape = 'u8[8192]{0}', space=vmem, size = 0x2000, scoped, tag = 'input window, operand 0, single buffered']
    #allocation4 [shape = 's32[1]{0}', space=sflag, size = 0x4, scoped, tag = 'scoped memory for tpu_custom_call.1']
    #allocation5 [shape = 's32[1]{0}', space=sflag, size = 0x4, scoped, tag = 'scoped memory for tpu_custom_call.1']
    #allocation6 [shape = 'u8[16384]{0}', space=vmem, size = 0x4000, scoped, tag = 'input window, operand 1, single buffered']
    #allocation7 [shape = 's32[1]{0}', space=sflag, size = 0x4, scoped, tag = 'scoped memory for tpu_custom_call.1']
    #allocation8 [shape = 'u8[8192]{0}', space=vmem, size = 0x2000, scoped, tag = 'output window, operand 0, single buffered']
    %8 = vsyncpa [#allocation4], 0
    %9 = vsyncpa [#allocation7], 0
    %10 = vsyncpa [#allocation5], 0
    // Predicated region
    $region2: #{tpu_custom_call.1} parent=1 // pred_check
      _
    $region3: #{tpu_custom_call.1} parent=1 // pred_check_branch
      %12 = sbr.rel (0) target = $region5
    $region4: #{tpu_custom_call.1} parent=1 // pred_region
      %14 = vsyncadd [#allocation4], 0
      %s15 = sshll.u32 %s0, 4
      %s16 = int_to_ptr.hbm [resolvable:$true] %s15
      %s17 = sshll.u32 [#allocation3], 4
      %s18 = int_to_ptr.vmem [resolvable:$true] %s17
      %23 = dma.hbm_to_vmem [thread:$0]  %s16, 256, %s18, [#allocation4], 128, 128, 8
    $region5: #{tpu_custom_call.1} parent=1 // pred_fallthru
      _
    // Predicated region
    $region6: #{tpu_custom_call.1} parent=1 // pred_check
      _
    $region7: #{tpu_custom_call.1} parent=1 // pred_check_branch
      %25 = sbr.rel (0) target = $region9
    $region8: #{tpu_custom_call.1} parent=1 // pred_region
      %27 = vsyncadd [#allocation7], 0
      %s28 = sshll.u32 %s1, 4
      %s29 = int_to_ptr.hbm [resolvable:$true] %s28
      %s30 = sshll.u32 [#allocation6], 4
      %s31 = int_to_ptr.vmem [resolvable:$true] %s30
      %36 = dma.hbm_to_vmem [thread:$0]  %s29, 512, %s31, [#allocation7], 128, 128, 8
    $region9: #{tpu_custom_call.1} parent=1 // pred_fallthru
      _
    // Predicated region
    $region10: #{tpu_custom_call.1} parent=1 // pred_check
      _
    $region11: #{tpu_custom_call.1} parent=1 // pred_check_branch
      %38 = sbr.rel (0) target = $region13
    $region12: #{tpu_custom_call.1} parent=1 // pred_region
      _
    $region13: #{tpu_custom_call.1} parent=1 // pred_fallthru
      _
    // Predicated region
    $region14: #{tpu_custom_call.1} parent=1 // pred_check
      _
    $region15: #{tpu_custom_call.1} parent=1 // pred_check_branch
      %40 = sbr.rel (0) target = $region17
    $region16: #{tpu_custom_call.1} parent=1 // pred_region
      %42 = dma.done [#allocation4], 256
    $region17: #{tpu_custom_call.1} parent=1 // pred_fallthru
      _
    // Predicated region
    $region18: #{tpu_custom_call.1} parent=1 // pred_check
      _
    $region19: #{tpu_custom_call.1} parent=1 // pred_check_branch
      %44 = sbr.rel (0) target = $region21
    $region20: #{tpu_custom_call.1} parent=1 // pred_region
      %46 = dma.done [#allocation7], 512
    $region21: #{tpu_custom_call.1} parent=1 // pred_fallthru
      _
    %p47 = scmp.eq.s32.totalorder 0, 0
    // Predicated region
    $region22: #{tpu_custom_call.1} parent=1 // pred_check
      %p48 = pneg %p47
    $region23: #{tpu_custom_call.1} parent=1 // pred_check_branch
      %50 = sbr.rel (%p48) target = $region25
    $region24: #{tpu_custom_call.1} parent=1 // pred_region
      %vm51 = vcmask 261120
      %52 = vst.msk [vmem:[#allocation2] sm:$0xff] %vm51, 0.0
      %53 = vst.msk [vmem:[#allocation2 + $0x8] sm:$0xff] %vm51, 0.0
    $region25: #{tpu_custom_call.1} parent=1 // pred_fallthru
      _
    %v54 = vld [vmem:[#allocation2] sm:$0xff]
    %v55 = vld [vmem:[#allocation2 + $0x8] sm:$0xff]
    %v56 = vld [vmem:[#allocation3] sm:$0xff]
    %v57 = vld [vmem:[#allocation3 + $0x8] sm:$0xff]
    %v58 = vld [vmem:[#allocation6] sm:$0xff]
    %v59 = vld [vmem:[#allocation6 + $0x8] sm:$0xff]
    %v60 = vld [vmem:[#allocation6 + $0x10] sm:$0xff]
    %v61 = vld [vmem:[#allocation6 + $0x18] sm:$0xff]
    %vm62 = vcmask 261120
    %v64 = vsel %vm62, %v56, 0
    %v67 = vsel %vm62, %v57, 0
    %69 = vmatpush.msra.mxu0 0.0
    %70 = vmatpush.msra.mxu0 0.0
    %71 = vmatpush.msra.mxu0 0.0
    %72 = vmatpush.msra.mxu0 0.0
    %73 = vmatpush.msra.mxu0 0.0
    %74 = vmatpush.msra.mxu0 0.0
    %75 = vmatpush.msra.mxu0 0.0
    %76 = vmatpush.msra.mxu0 0.0
    %77 = vmatpush.msra.mxu0 0.0
    %78 = vmatpush.msra.mxu0 0.0
    %79 = vmatpush.msra.mxu0 0.0
    %80 = vmatpush.msra.mxu0 0.0
    %81 = vmatpush.msra.mxu0 %v61
    %82 = vmatpush.msra.mxu0 %v60
    %83 = vmatpush.msra.mxu0 %v59
    %84 = vmatpush.msra.mxu0 %v58
    %85 = vmatmul.f32.gmra.mxu0 %v64
    %v86 = vpop.f32.mrf.mxu0
    %v87 = vadd.f32 0.0, %v86
    %88 = vmatmul.f32.gmra.mxu0 %v67
    %v89 = vpop.f32.mrf.mxu0
    %v90 = vadd.f32 0.0, %v89
    %91 = vdwg.mxu0
    %v92 = vadd.f32 %v54, %v87
    %v93 = vadd.f32 %v55, %v90
    %94 = vst.msk [vmem:[#allocation2] sm:$0xff] %vm62, %v92
    %95 = vst.msk [vmem:[#allocation2 + $0x8] sm:$0xff] %vm62, %v93
    // Predicated region
    $region26: #{tpu_custom_call.1} parent=1 // pred_check
      %p96 = pneg %p47
    $region27: #{tpu_custom_call.1} parent=1 // pred_check_branch
      %98 = sbr.rel (%p96) target = $region29
    $region28: #{tpu_custom_call.1} parent=1 // pred_region
      %v99 = vld [vmem:[#allocation2] sm:$0xff]
      %v100 = vld [vmem:[#allocation2 + $0x8] sm:$0xff]
      %v101 = vld [vmem:[%s2] sm:$0x1]
      %v103 = vperm.slane %v101, 0
      %v105 = vadd.f32 %v99, %v103
      %v106 = vadd.f32 %v100, %v103
      %107 = vst.msk [vmem:[#allocation8] sm:$0xff] %vm62, %v105
      %108 = vst.msk [vmem:[#allocation8 + $0x8] sm:$0xff] %vm62, %v106
    $region29: #{tpu_custom_call.1} parent=1 // pred_fallthru
      _
    // Predicated region
    $region30: #{tpu_custom_call.1} parent=1 // pred_check
      _
    $region31: #{tpu_custom_call.1} parent=1 // pred_check_branch
      %110 = sbr.rel (0) target = $region33
    $region32: #{tpu_custom_call.1} parent=1 // pred_region
      %112 = vsyncadd [#allocation5], 0
      %s113 = sshll.u32 [#allocation8], 4
      %s114 = int_to_ptr.vmem [resolvable:$true] %s113
      %s115 = sshll.u32 %s3, 4
      %s116 = int_to_ptr.hbm [resolvable:$true] %s115
      %121 = dma.vmem_to_hbm [thread:$0]  %s114, 256, %s116, [#allocation5], 128, 128, 8
    $region33: #{tpu_custom_call.1} parent=1 // pred_fallthru
      _
    // Predicated region
    $region34: #{tpu_custom_call.1} parent=1 // pred_check
      _
    $region35: #{tpu_custom_call.1} parent=1 // pred_check_branch
      %123 = sbr.rel (0) target = $region37
    $region36: #{tpu_custom_call.1} parent=1 // pred_region
      %125 = dma.done [#allocation5], 256
    $region37: #{tpu_custom_call.1} parent=1 // pred_fallthru
      _
    %126 = vsyncpa [#allocation4], 1
    %127 = vsyncpa [#allocation7], 1
    %128 = vsyncpa [#allocation5], 1

</llo_original>
